<compile_context>
chip_gen: v5e
topology: v5e:2x2
jax: 0.10.0
libtpu: 0.0.40
codegen_flags: <defaults>
</compile_context>

<pallas_src>
import functools

import jax
import jax.numpy as jnp
from jax.experimental import pallas as pl
from jax.experimental.pallas import tpu as pltpu


_NONLIN = {
    "relu": lambda v: jnp.maximum(v, 0.0),
    "tanh": jnp.tanh,
}


def _mlp_normal_const_sigma_kernel(n_hidden, nonlinearity,
                                   logsigma_ref, x_ref, *refs):
    """refs = W0, b0, ..., W_{n-1}, b_{n-1}, W_mu, b_mu, mu_out, sigma_out.

    Weights are pre-transposed to (in_dim, out_dim); biases are (1, out_dim).
    """
    mu_out_ref, sigma_out_ref = refs[-2], refs[-1]
    params = refs[:-2]
    act = _NONLIN[nonlinearity]

    h = x_ref[...]
    # Hidden layers: h = act(h @ W_i + b_i)   (MXU matmul, f32 accumulation)
    for i in range(n_hidden):
        w = params[2 * i][...]
        b = params[2 * i + 1][...]
        h = act(jnp.dot(h, w, preferred_element_type=jnp.float32) + b)

    # Final mu layer (no nonlinearity).
    w_mu = params[2 * n_hidden][...]
    b_mu = params[2 * n_hidden + 1][...]
    mu_out_ref[...] = (
        jnp.dot(h, w_mu, preferred_element_type=jnp.float32) + b_mu
    ).astype(mu_out_ref.dtype)

    # sigma epilogue: exponentiate the scalar ONCE (single EUP element),
    # then lane-broadcast across D (VPU fill), instead of exp over a [1,D] tile.
    ls = logsigma_ref[0]
    sig = jnp.exp(jnp.full((1, 1), ls, jnp.float32))
    sigma_out_ref[...] = jnp.broadcast_to(sig, sigma_out_ref.shape)


def mlp_normal_constant_sigma_forward(x, weights, biases, logsigma,
                                      *, nonlinearity="tanh"):
    """Fused MLP forward.

    x:        f32[B, net_dims[0]]
    weights:  list of f32[out_dim, in_dim]   (PyTorch nn.Linear layout);
              the last entry is the mu layer.
    biases:   list of f32[out_dim]
    logsigma: f32[1]
    Returns (mu: f32[B, net_dims[-1]], sigma: f32[net_dims[-1]]).
    """
    assert len(weights) == len(biases) and len(weights) >= 1
    n_hidden = len(weights) - 1
    B = x.shape[0]
    d_out = weights[-1].shape[0]

    x = jnp.asarray(x, jnp.float32)
    logsigma = jnp.asarray(logsigma, jnp.float32).reshape(1)

    flat_params = []
    for w, b in zip(weights, biases):
        flat_params.append(jnp.asarray(w, jnp.float32).T)              # (in, out)
        flat_params.append(jnp.asarray(b, jnp.float32).reshape(1, -1))  # (1, out)

    kernel = functools.partial(_mlp_normal_const_sigma_kernel,
                               n_hidden, nonlinearity)

    vmem = pl.BlockSpec(memory_space=pltpu.MemorySpace.VMEM)
    smem = pl.BlockSpec(memory_space=pltpu.MemorySpace.SMEM)

    mu, sigma2d = pl.pallas_call(
        kernel,
        out_shape=(
            jax.ShapeDtypeStruct((B, d_out), jnp.float32),
            jax.ShapeDtypeStruct((1, d_out), jnp.float32),
        ),
        in_specs=[smem, vmem] + [vmem] * len(flat_params),
        out_specs=(vmem, vmem),
    )(logsigma, x, *flat_params)

    return mu, sigma2d.reshape(d_out)


def make_params(net_dims, init_logsigma, key):
    """Deterministic parameter init mirroring nn.Linear default (uniform ±1/sqrt(in))."""
    weights, biases = [], []
    pairs = list(zip(net_dims[:-1], net_dims[1:]))
    keys = jax.random.split(key, 2 * len(pairs))
    for li, (d_in, d_out) in enumerate(pairs):
        bound = d_in ** -0.5
        w = jax.random.uniform(keys[2 * li], (d_out, d_in), jnp.float32,
                               -bound, bound)
        b = jax.random.uniform(keys[2 * li + 1], (d_out,), jnp.float32,
                               -bound, bound)
        weights.append(w)
        biases.append(b)
    logsigma = jnp.array([init_logsigma], dtype=jnp.float32)
    return weights, biases, logsigma


def _reference(x, weights, biases, logsigma, nonlinearity="tanh"):
    act = _NONLIN[nonlinearity]
    h = x
    for w, b in zip(weights[:-1], biases[:-1]):
        h = act(h @ w.T + b)
    mu = h @ weights[-1].T + biases[-1]
    sigma = jnp.exp(jnp.broadcast_to(logsigma, (weights[-1].shape[0],)))
    return mu, sigma


if __name__ == "__main__":
    # Small configuration: net_dims = [16, 32, 32] -> one hidden layer + mu layer.
    # TODO(synk): `nonlinearity` is an arbitrary module in PyTorch; only
    # tanh/relu are baked into the kernel (selected statically).
    net_dims = [16, 32, 32]
    batch = 2
    init_logsigma = -1.0
    nonlinearity = "tanh"

    key = jax.random.PRNGKey(0)
    k_x, k_p = jax.random.split(key)
    x = jax.random.normal(k_x, (batch, net_dims[0]), jnp.float32)
    weights, biases, logsigma = make_params(net_dims, init_logsigma, k_p)

    mu_out, sigma_out = mlp_normal_constant_sigma_forward(
        x, weights, biases, logsigma, nonlinearity=nonlinearity)
    jax.block_until_ready((mu_out, sigma_out))

    ref_mu, ref_sigma = _reference(x, weights, biases, logsigma, nonlinearity)

    assert mu_out.shape == (batch, net_dims[-1])
    assert sigma_out.shape == (net_dims[-1],)
    # MXU f32 matmul passes may differ slightly from XLA's default precision.
    assert jnp.allclose(mu_out, ref_mu, rtol=2e-2, atol=2e-2)
    assert jnp.allclose(sigma_out, ref_sigma, rtol=1e-6)

    print("KERNEL_OK")
</pallas_src>

<mosaic_0001>
module attributes {stable_mosaic.version = 11 : i64} {
  func.func @_mlp_normal_const_sigma_kernel(%arg0: memref<1xf32, #tpu.memory_space<smem>>, %arg1: memref<2x16xf32, #tpu.memory_space<vmem>>, %arg2: memref<16x32xf32, #tpu.memory_space<vmem>>, %arg3: memref<1x32xf32, #tpu.memory_space<vmem>>, %arg4: memref<32x32xf32, #tpu.memory_space<vmem>>, %arg5: memref<1x32xf32, #tpu.memory_space<vmem>>, %arg6: memref<2x32xf32, #tpu.memory_space<vmem>>, %arg7: memref<1x32xf32, #tpu.memory_space<vmem>>) attributes {dimension_semantics = [], scalar_prefetch = 0 : i64, scratch_operands = 0 : i64, tpu.core_type = #tpu.core_type<tc>} {
    %c0 = arith.constant 0 : index
    %c0_0 = arith.constant 0 : index
    %0 = vector.load %arg1[%c0, %c0_0] : memref<2x16xf32, #tpu.memory_space<vmem>>, vector<2x16xf32>
    %c0_1 = arith.constant 0 : index
    %c0_2 = arith.constant 0 : index
    %1 = vector.load %arg2[%c0_1, %c0_2] : memref<16x32xf32, #tpu.memory_space<vmem>>, vector<16x32xf32>
    %c0_3 = arith.constant 0 : index
    %c0_4 = arith.constant 0 : index
    %2 = vector.load %arg3[%c0_3, %c0_4] : memref<1x32xf32, #tpu.memory_space<vmem>>, vector<1x32xf32>
    %cst = arith.constant dense<0.000000e+00> : vector<2x32xf32>
    %3 = tpu.matmul %0, %1, %cst {dimension_numbers = #tpu.dot_dimension_numbers<[1], [0], [0], [1], [0, 0, 1, 1], [], []>} : vector<2x16xf32>, vector<16x32xf32>, vector<2x32xf32> -> vector<2x32xf32>
    %4 = vector.broadcast %2 : vector<1x32xf32> to vector<2x32xf32>
    %5 = arith.addf %3, %4 : vector<2x32xf32>
    %6 = math.tanh %5 : vector<2x32xf32>
    %c0_5 = arith.constant 0 : index
    %c0_6 = arith.constant 0 : index
    %7 = vector.load %arg4[%c0_5, %c0_6] : memref<32x32xf32, #tpu.memory_space<vmem>>, vector<32x32xf32>
    %c0_7 = arith.constant 0 : index
    %c0_8 = arith.constant 0 : index
    %8 = vector.load %arg5[%c0_7, %c0_8] : memref<1x32xf32, #tpu.memory_space<vmem>>, vector<1x32xf32>
    %cst_9 = arith.constant dense<0.000000e+00> : vector<2x32xf32>
    %9 = tpu.matmul %6, %7, %cst_9 {dimension_numbers = #tpu.dot_dimension_numbers<[1], [0], [0], [1], [0, 0, 1, 1], [], []>} : vector<2x32xf32>, vector<32x32xf32>, vector<2x32xf32> -> vector<2x32xf32>
    %10 = vector.broadcast %8 : vector<1x32xf32> to vector<2x32xf32>
    %11 = arith.addf %9, %10 : vector<2x32xf32>
    %c0_10 = arith.constant 0 : index
    %c0_11 = arith.constant 0 : index
    %12 = vector.load %arg6[%c0_10, %c0_11] : memref<2x32xf32, #tpu.memory_space<vmem>>, vector<2x32xf32>
    tpu.vector_store %arg6[%c0_10, %c0_11], %11 {strides = array<i32>} : memref<2x32xf32, #tpu.memory_space<vmem>>, vector<2x32xf32>,
    %c0_12 = arith.constant 0 : index
    %13 = memref.load %arg0[%c0_12] : memref<1xf32, #tpu.memory_space<smem>>
    %14 = vector.broadcast %13 : f32 to vector<1x1xf32>
    %15 = math.exp %14 : vector<1x1xf32>
    %16 = vector.shape_cast %15 : vector<1x1xf32> to vector<1x1xf32>
    %17 = vector.broadcast %16 : vector<1x1xf32> to vector<1x32xf32>
    %c0_13 = arith.constant 0 : index
    %c0_14 = arith.constant 0 : index
    %18 = vector.load %arg7[%c0_13, %c0_14] : memref<1x32xf32, #tpu.memory_space<vmem>>, vector<1x32xf32>
    tpu.vector_store %arg7[%c0_13, %c0_14], %17 {strides = array<i32>} : memref<1x32xf32, #tpu.memory_space<vmem>>, vector<1x32xf32>,
    return
  }
}

</mosaic_0001>

<llo_original>
// kernel: tpu_custom_call.1
$region0: #{tpu_custom_call.1}
  #allocation0 [shape = 'u32[]', space=smem, size = 0x4, offset = 0x4, fixed_abs, tag = 'smem constant byte address 0x4 - core index']
  #allocation1 [shape = 'u32[72,128]{1,0:T(1,128)}', space=vmem, size = 0x9000, scoped, tag = 'internal scratch']
  #allocation2 [shape = 'f32[1]{0:T(128)S(6)}', space=smem, size = 0x200, scoped, tag = 'scoped memory for tpu_custom_call.1']
  %s0 = inlined_call_operand.<no memory space> [shape: f32[1], index: 0, kind: input, shape index: {}]
  %s1 = inlined_call_operand.vmem [shape: f32[2,16], index: 1, kind: input, shape index: {}]
  %s2 = inlined_call_operand.hbm [shape: f32[16,32], index: 2, kind: input, shape index: {}]
  %s3 = inlined_call_operand.vmem [shape: f32[1,32], index: 3, kind: input, shape index: {}]
  %s4 = inlined_call_operand.hbm [shape: f32[32,32], index: 4, kind: input, shape index: {}]
  %s5 = inlined_call_operand.vmem [shape: f32[1,32], index: 5, kind: input, shape index: {}]
  %s6 = inlined_call_operand.hbm [shape: f32[2,32], index: 6, kind: output, shape index: {0}]
  %s7 = inlined_call_operand.hbm [shape: f32[1,32], index: 7, kind: output, shape index: {1}]
  %8 = xla_tuple %s6, %s7
  %s9 = sld [smem:[#allocation0]]
  $region50: #{tpu_custom_call.1} parent=0
    _
  %s11 = ssub.s32 1, %s9
  %s12 = scalar_select 0, %s11, %s9
  %13 = sst [smem:[#allocation2]] %s0
  $region1: #{tpu_custom_call.1} parent=0
    #allocation3 [shape = 'u8[8192]{0}', space=vmem, size = 0x2000, scoped, tag = 'input window, operand 2, single buffered']
    #allocation4 [shape = 's32[1]{0}', space=sflag, size = 0x4, scoped, tag = 'scoped memory for tpu_custom_call.1']
    #allocation5 [shape = 's32[1]{0}', space=sflag, size = 0x4, scoped, tag = 'scoped memory for tpu_custom_call.1']
    #allocation6 [shape = 'u8[16384]{0}', space=vmem, size = 0x4000, scoped, tag = 'input window, operand 4, single buffered']
    #allocation7 [shape = 's32[1]{0}', space=sflag, size = 0x4, scoped, tag = 'scoped memory for tpu_custom_call.1']
    #allocation8 [shape = 'u8[1024]{0}', space=vmem, size = 0x400, scoped, tag = 'output window, operand 0, single buffered']
    #allocation9 [shape = 'u8[512]{0}', space=vmem, size = 0x400, scoped, tag = 'output window, operand 1, single buffered']
    #allocation10 [shape = 's32[1]{0}', space=sflag, size = 0x4, scoped, tag = 'scoped memory for tpu_custom_call.1']
    %14 = vsyncpa [#allocation4], 0
    %15 = vsyncpa [#allocation7], 0
    %16 = vsyncpa [#allocation5], 0
    %17 = vsyncpa [#allocation10], 0
    // Predicated region
    $region2: #{tpu_custom_call.1} parent=1 // pred_check
      _
    $region3: #{tpu_custom_call.1} parent=1 // pred_check_branch
      %19 = sbr.rel (0) target = $region5
    $region4: #{tpu_custom_call.1} parent=1 // pred_region
      _
    $region5: #{tpu_custom_call.1} parent=1 // pred_fallthru
      _
    // Predicated region
    $region6: #{tpu_custom_call.1} parent=1 // pred_check
      _
    $region7: #{tpu_custom_call.1} parent=1 // pred_check_branch
      %21 = sbr.rel (0) target = $region9
    $region8: #{tpu_custom_call.1} parent=1 // pred_region
      _
    $region9: #{tpu_custom_call.1} parent=1 // pred_fallthru
      _
    // Predicated region
    $region10: #{tpu_custom_call.1} parent=1 // pred_check
      _
    $region11: #{tpu_custom_call.1} parent=1 // pred_check_branch
      %23 = sbr.rel (0) target = $region13
    $region12: #{tpu_custom_call.1} parent=1 // pred_region
      %25 = vsyncadd [#allocation4], 0
      %s26 = sshll.u32 %s2, 4
      %s27 = int_to_ptr.hbm [resolvable:$true] %s26
      %s28 = sshll.u32 [#allocation3], 4
      %s29 = int_to_ptr.vmem [resolvable:$true] %s28
      %34 = dma.hbm_to_vmem [thread:$0]  %s27, 256, %s29, [#allocation4], 128, 128, 8
    $region13: #{tpu_custom_call.1} parent=1 // pred_fallthru
      _
    // Predicated region
    $region14: #{tpu_custom_call.1} parent=1 // pred_check
      _
    $region15: #{tpu_custom_call.1} parent=1 // pred_check_branch
      %36 = sbr.rel (0) target = $region17
    $region16: #{tpu_custom_call.1} parent=1 // pred_region
      _
    $region17: #{tpu_custom_call.1} parent=1 // pred_fallthru
      _
    // Predicated region
    $region18: #{tpu_custom_call.1} parent=1 // pred_check
      _
    $region19: #{tpu_custom_call.1} parent=1 // pred_check_branch
      %38 = sbr.rel (0) target = $region21
    $region20: #{tpu_custom_call.1} parent=1 // pred_region
      %40 = vsyncadd [#allocation7], 0
      %s41 = sshll.u32 %s4, 4
      %s42 = int_to_ptr.hbm [resolvable:$true] %s41
      %s43 = sshll.u32 [#allocation6], 4
      %s44 = int_to_ptr.vmem [resolvable:$true] %s43
      %49 = dma.hbm_to_vmem [thread:$0]  %s42, 512, %s44, [#allocation7], 128, 128, 8
    $region21: #{tpu_custom_call.1} parent=1 // pred_fallthru
      _
    // Predicated region
    $region22: #{tpu_custom_call.1} parent=1 // pred_check
      _
    $region23: #{tpu_custom_call.1} parent=1 // pred_check_branch
      %51 = sbr.rel (0) target = $region25
    $region24: #{tpu_custom_call.1} parent=1 // pred_region
      _
    $region25: #{tpu_custom_call.1} parent=1 // pred_fallthru
      _
    // Predicated region
    $region26: #{tpu_custom_call.1} parent=1 // pred_check
      _
    $region27: #{tpu_custom_call.1} parent=1 // pred_check_branch
      %53 = sbr.rel (0) target = $region29
    $region28: #{tpu_custom_call.1} parent=1 // pred_region
      %55 = dma.done [#allocation4], 256
    $region29: #{tpu_custom_call.1} parent=1 // pred_fallthru
      _
    // Predicated region
    $region30: #{tpu_custom_call.1} parent=1 // pred_check
      _
    $region31: #{tpu_custom_call.1} parent=1 // pred_check_branch
      %57 = sbr.rel (0) target = $region33
    $region32: #{tpu_custom_call.1} parent=1 // pred_region
      %59 = dma.done [#allocation7], 512
    $region33: #{tpu_custom_call.1} parent=1 // pred_fallthru
      _
    %v60 = vld [vmem:[%s1] sm:$0x3]
    %v61 = vld [vmem:[#allocation3] sm:$0xff]
    %v62 = vld [vmem:[#allocation3 + $0x8] sm:$0xff]
    %v63 = vld [vmem:[%s3] sm:$0x1]
    %v65 = vperm.slane %v63, 0
    %vm67 = vcmask 130048
    %v69 = vsel %vm67, %v60, 0
    %71 = vmatpush.msra.mxu0 0.0
    %72 = vmatpush.msra.mxu0 0.0
    %73 = vmatpush.msra.mxu0 0.0
    %74 = vmatpush.msra.mxu0 0.0
    %75 = vmatpush.msra.mxu0 0.0
    %76 = vmatpush.msra.mxu0 0.0
    %77 = vmatpush.msra.mxu0 0.0
    %78 = vmatpush.msra.mxu0 0.0
    %79 = vmatpush.msra.mxu0 0.0
    %80 = vmatpush.msra.mxu0 0.0
    %81 = vmatpush.msra.mxu0 0.0
    %82 = vmatpush.msra.mxu0 0.0
    %83 = vmatpush.msra.mxu0 0.0
    %84 = vmatpush.msra.mxu0 0.0
    %85 = vmatpush.msra.mxu0 %v62
    %86 = vmatpush.msra.mxu0 %v61
    %87 = vmatmul.f32.gmra.mxu0 %v69
    %v88 = vpop.f32.mrf.mxu0
    %v89 = vadd.f32 %v65, %v88
    %90 = vdwg.mxu0
    %v91 = vtanh.pop %v89
    %v92 = vld [vmem:[#allocation6] sm:$0xff]
    %v93 = vld [vmem:[#allocation6 + $0x8] sm:$0xff]
    %v94 = vld [vmem:[#allocation6 + $0x10] sm:$0xff]
    %v95 = vld [vmem:[#allocation6 + $0x18] sm:$0xff]
    %v96 = vld [vmem:[%s5] sm:$0x1]
    %v98 = vperm.slane %v96, 0
    %vm100 = vcmask 261120
    %v102 = vsel %vm100, %v91, 0
    %104 = vmatpush.msra.mxu0 0.0
    %105 = vmatpush.msra.mxu0 0.0
    %106 = vmatpush.msra.mxu0 0.0
    %107 = vmatpush.msra.mxu0 0.0
    %108 = vmatpush.msra.mxu0 0.0
    %109 = vmatpush.msra.mxu0 0.0
    %110 = vmatpush.msra.mxu0 0.0
    %111 = vmatpush.msra.mxu0 0.0
    %112 = vmatpush.msra.mxu0 0.0
    %113 = vmatpush.msra.mxu0 0.0
    %114 = vmatpush.msra.mxu0 0.0
    %115 = vmatpush.msra.mxu0 0.0
    %116 = vmatpush.msra.mxu0 %v95
    %117 = vmatpush.msra.mxu0 %v94
    %118 = vmatpush.msra.mxu0 %v93
    %119 = vmatpush.msra.mxu0 %v92
    %120 = vmatmul.f32.gmra.mxu0 %v102
    %v121 = vpop.f32.mrf.mxu0
    %v122 = vadd.f32 %v98, %v121
    %123 = vdwg.mxu0
    %vm124 = vcmask 254976
    %125 = vst.msk [vmem:[#allocation8] sm:$0x3] %vm124, %v122
    %s126 = sld [smem:[#allocation2]]
    %v127 = vstv %s126
    %v128 = vmul.f32 %v127, 1.442695
    %v129 = vpow.pop %v128
    %vm130 = vcmask 253952
    %131 = vst.msk [vmem:[#allocation9] sm:$0x1] %vm130, %v129
    // Predicated region
    $region34: #{tpu_custom_call.1} parent=1 // pred_check
      _
    $region35: #{tpu_custom_call.1} parent=1 // pred_check_branch
      %133 = sbr.rel (0) target = $region37
    $region36: #{tpu_custom_call.1} parent=1 // pred_region
      %135 = vsyncadd [#allocation5], 0
      %s137 = sshll.u32 [#allocation8], 4
      %s138 = int_to_ptr.vmem [resolvable:$true] %s137
      %s139 = sshll.u32 %s6, 4
      %s140 = int_to_ptr.hbm [resolvable:$true] %s139
      %142 = dma.vmem_to_hbm [thread:$0]  %s138, 32, %s140, [#allocation5]
    $region37: #{tpu_custom_call.1} parent=1 // pred_fallthru
      _
    // Predicated region
    $region38: #{tpu_custom_call.1} parent=1 // pred_check
      _
    $region39: #{tpu_custom_call.1} parent=1 // pred_check_branch
      %144 = sbr.rel (0) target = $region41
    $region40: #{tpu_custom_call.1} parent=1 // pred_region
      %146 = vsyncadd [#allocation10], 0
      %s148 = sshll.u32 [#allocation9], 4
      %s149 = int_to_ptr.vmem [resolvable:$true] %s148
      %s150 = sshll.u32 %s7, 4
      %s151 = int_to_ptr.hbm [resolvable:$true] %s150
      %153 = dma.vmem_to_hbm [thread:$0]  %s149, 16, %s151, [#allocation10]
    $region41: #{tpu_custom_call.1} parent=1 // pred_fallthru
      _
    // Predicated region
    $region42: #{tpu_custom_call.1} parent=1 // pred_check
      _
    $region43: #{tpu_custom_call.1} parent=1 // pred_check_branch
      %155 = sbr.rel (0) target = $region45
    $region44: #{tpu_custom_call.1} parent=1 // pred_region
      %157 = dma.done [#allocation5], 32
    $region45: #{tpu_custom_call.1} parent=1 // pred_fallthru
      _
    // Predicated region
    $region46: #{tpu_custom_call.1} parent=1 // pred_check
      _
    $region47: #{tpu_custom_call.1} parent=1 // pred_check_branch
      %159 = sbr.rel (0) target = $region49
    $region48: #{tpu_custom_call.1} parent=1 // pred_region
      %161 = dma.done [#allocation10], 16
    $region49: #{tpu_custom_call.1} parent=1 // pred_fallthru
      _
    %162 = vsyncpa [#allocation4], 1
    %163 = vsyncpa [#allocation7], 1
    %164 = vsyncpa [#allocation5], 1
    %165 = vsyncpa [#allocation10], 1

</llo_original>
